<compile_context>
chip_gen: v6e
topology: v6e:2x2x1
jax: 0.10.0
libtpu: 0.0.40
codegen_flags: <defaults>
</compile_context>

<pallas_src>
import functools

import jax
import jax.numpy as jnp
from jax.experimental import pallas as pl
from jax.experimental.pallas import tpu as pltpu


N_CHANNELS = {"efficientnet-b0": 1280, "efficientnet-b3": 1536}
ENCODER = "efficientnet-b0"


def _pick_spatial_tile(p, cap):
    """Largest divisor of p that is a multiple of 8 and <= cap (else p itself)."""
    for t in range(min(p, cap), 0, -1):
        if p % t == 0 and t % 8 == 0:
            return t
    return p  # TODO(synk): non-8-divisible P falls back to a single full tile.


def _feature_kernel(patches_ref, w1_ref, b1_ref, w2_ref, b2_ref, o_ref, acc_ref,
                    *, inv_p):
    # patches_ref: (pt, K)    bf16 im2col patch chunk of the current image
    # w1_ref:      (K, C1)    stem conv weights, BN scale folded, bf16
    # b1_ref:      (1, C1)    stem folded-BN bias, f32
    # w2_ref:      (C1, Cout) head 1x1 weights, BN scale folded, bf16
    # b2_ref:      (1, Cout)  head folded-BN bias, f32
    # o_ref:       (1, Cout)  pooled + flattened features of the current image
    # acc_ref:     (1, Cout)  f32 running sum over spatial chunks (VMEM scratch)
    j = pl.program_id(1)

    @pl.when(j == 0)
    def _init():
        acc_ref[...] = jnp.zeros_like(acc_ref)

    # Stem conv as matmul (bf16 MXU operands, f32 acc) + folded-BN bias + swish.
    p = patches_ref[...]
    h = jnp.dot(p, w1_ref[...], preferred_element_type=jnp.float32)     # (pt, C1)
    h = h + b1_ref[...]
    h = h * jax.nn.sigmoid(h)                                            # swish (EUP)

    # Head 1x1 conv: bf16 MXU operands, f32 accumulation, bias + swish.
    g = jnp.dot(h.astype(jnp.bfloat16), w2_ref[...],
                preferred_element_type=jnp.float32)                      # (pt, Cout)
    g = g + b2_ref[...]
    g = g * jax.nn.sigmoid(g)

    # Partial global-average-pool: sublane-sum of this spatial chunk, accumulated.
    acc_ref[...] += jnp.sum(g, axis=0, keepdims=True)                    # (1, Cout)

    @pl.when(j == pl.num_programs(1) - 1)
    def _finish():
        o_ref[...] = acc_ref[...] * inv_p


def extract_features(x_nchw, params, max_rows_per_tile=1024):
    """x_nchw: (B, Cin, H, W) float32. Returns (B, Cout) float32."""
    w1, s1, b1, w2, s2, b2 = params
    B, Cin, H, W = x_nchw.shape
    Ho, Wo = H // 2, W // 2
    P = Ho * Wo
    K = 3 * 3 * Cin
    C1 = w1.shape[1]
    Cout = w2.shape[1]

    # ---- glue: NCHW -> NHWC, pad, im2col for the 3x3 stride-2 stem conv ----
    x = jnp.transpose(x_nchw, (0, 2, 3, 1))                    # (B, H, W, Cin)
    x = jnp.pad(x, ((0, 0), (1, 1), (1, 1), (0, 0)))
    cols = []
    for kh in range(3):
        for kw in range(3):
            cols.append(x[:, kh:kh + 2 * Ho:2, kw:kw + 2 * Wo:2, :])  # (B,Ho,Wo,Cin)
    patches = jnp.concatenate(cols, axis=-1).reshape(B, P, K).astype(jnp.bfloat16)

    # Fold BN scales into the conv weights once at trace time; bf16 MXU operands.
    w1f = (w1 * s1).astype(jnp.bfloat16)                       # (K, C1)
    w2f = (w2 * s2).astype(jnp.bfloat16)                       # (C1, Cout)
    b1f = b1.astype(jnp.float32)
    b2f = b2.astype(jnp.float32)

    # Spatial tile: largest divisor of P (multiple of 8) fitting the VMEM budget
    # (dominant per-row cost is Cout*4 bytes for the f32 head activation chunk).
    pt = _pick_spatial_tile(P, max_rows_per_tile)
    n_p = P // pt
    inv_p = 1.0 / P

    kernel = functools.partial(_feature_kernel, inv_p=inv_p)

    flops = 2 * B * P * (K * C1 + C1 * Cout)
    transcendentals = B * P * (C1 + Cout)
    bytes_accessed = (B * P * K * 2 + K * C1 * 2 + C1 * 4
                      + C1 * Cout * 2 + Cout * 4 + B * Cout * 4)

    out = pl.pallas_call(
        kernel,
        out_shape=jax.ShapeDtypeStruct((B, 1, Cout), jnp.float32),
        grid=(B, n_p),
        in_specs=[
            pl.BlockSpec((None, pt, K), lambda i, j: (i, j, 0)),   # patch chunk
            pl.BlockSpec((K, C1), lambda i, j: (0, 0)),            # folded stem weight
            pl.BlockSpec((1, C1), lambda i, j: (0, 0)),            # stem bias
            pl.BlockSpec((C1, Cout), lambda i, j: (0, 0)),         # folded head weight
            pl.BlockSpec((1, Cout), lambda i, j: (0, 0)),          # head bias
        ],
        out_specs=pl.BlockSpec((None, 1, Cout), lambda i, j: (i, 0, 0)),
        scratch_shapes=[pltpu.VMEM((1, Cout), jnp.float32)],
        compiler_params=pltpu.CompilerParams(
            dimension_semantics=("parallel", "arbitrary"),
            vmem_limit_bytes=32 * 1024 * 1024),
        cost_estimate=pl.CostEstimate(flops=flops,
                                      transcendentals=transcendentals,
                                      bytes_accessed=bytes_accessed),
    )(patches, w1f, b1f, w2f, b2f)
    return out.reshape(B, Cout)


def init_params(key, cin=3, c1=32, cout=N_CHANNELS[ENCODER]):
    """Deterministic synthetic weights (stem 3x3 conv + head 1x1 conv, BN params)."""
    k1, k2, k3, k4, k5, k6 = jax.random.split(key, 6)
    K = 3 * 3 * cin
    w1 = jax.random.normal(k1, (K, c1), jnp.float32) * (2.0 / K) ** 0.5
    s1 = 1.0 + 0.1 * jax.random.normal(k3, (1, c1), jnp.float32)
    b1 = 0.1 * jax.random.normal(k4, (1, c1), jnp.float32)
    w2 = jax.random.normal(k2, (c1, cout), jnp.float32) * (2.0 / c1) ** 0.5
    s2 = 1.0 + 0.1 * jax.random.normal(k5, (1, cout), jnp.float32)
    b2 = 0.1 * jax.random.normal(k6, (1, cout), jnp.float32)
    return (w1, s1, b1, w2, s2, b2)


def _reference(x_nchw, params):
    """Pure-JAX reference for the same synthetic feature extractor (bf16 matmuls)."""
    w1, s1, b1, w2, s2, b2 = params
    B, Cin, H, W = x_nchw.shape
    Ho, Wo = H // 2, W // 2
    x = jnp.transpose(x_nchw, (0, 2, 3, 1))
    x = jnp.pad(x, ((0, 0), (1, 1), (1, 1), (0, 0)))
    cols = []
    for kh in range(3):
        for kw in range(3):
            cols.append(x[:, kh:kh + 2 * Ho:2, kw:kw + 2 * Wo:2, :])
    p = jnp.concatenate(cols, axis=-1).reshape(B, Ho * Wo, -1).astype(jnp.bfloat16)
    h = jnp.einsum("bpk,kc->bpc", p, (w1 * s1).astype(jnp.bfloat16),
                   preferred_element_type=jnp.float32) + b1
    h = h * jax.nn.sigmoid(h)
    g = jnp.einsum("bpc,cd->bpd", h.astype(jnp.bfloat16),
                   (w2 * s2).astype(jnp.bfloat16),
                   preferred_element_type=jnp.float32) + b2
    g = g * jax.nn.sigmoid(g)
    return jnp.mean(g, axis=1)


if __name__ == "__main__":
    key = jax.random.PRNGKey(0)
    kx, kp = jax.random.split(key)
    # Small image batch consistent with the module's forward: NCHW, 3 channels.
    x = jax.random.normal(kx, (2, 3, 16, 16), jnp.float32)
    params = init_params(kp)

    # max_rows_per_tile=32 -> 2 spatial chunks per image, exercising the
    # pl.when init/accumulate/finalize reduction path.
    out = extract_features(x, params, max_rows_per_tile=32)
    out = jax.block_until_ready(out)

    ref = _reference(x, params)
    assert out.shape == (2, N_CHANNELS[ENCODER]), out.shape
    assert jnp.allclose(out, ref, atol=1e-3, rtol=1e-3), \
        float(jnp.max(jnp.abs(out - ref)))
    print("KERNEL_OK")
</pallas_src>

<mosaic_0001>
module attributes {stable_mosaic.version = 11 : i64} {
  func.func @_feature_kernel(%arg0: i32, %arg1: i32, %arg2: memref<1x32x27xbf16, #tpu.memory_space<vmem>>, %arg3: memref<27x32xbf16, #tpu.memory_space<vmem>>, %arg4: memref<1x32xf32, #tpu.memory_space<vmem>>, %arg5: memref<32x1280xbf16, #tpu.memory_space<vmem>>, %arg6: memref<1x1280xf32, #tpu.memory_space<vmem>>, %arg7: memref<1x1x1280xf32, #tpu.memory_space<vmem>>, %arg8: memref<1x1280xf32, #tpu.memory_space<vmem>>) attributes {dimension_semantics = [#tpu.dimension_semantics<parallel>, #tpu.dimension_semantics<arbitrary>], iteration_bounds = array<i64: 2, 2>, scalar_prefetch = 0 : i64, scratch_operands = 1 : i64, tpu.core_type = #tpu.core_type<tc>, window_params = [{transform_indices = @transform_0, window_bounds = array<i64: 1, 32, 27>}, {pipeline_mode = #tpu.pipeline_mode<synchronous>, transform_indices = @transform_1, window_bounds = array<i64: 27, 32>}, {pipeline_mode = #tpu.pipeline_mode<synchronous>, transform_indices = @transform_2, window_bounds = array<i64: 1, 32>}, {pipeline_mode = #tpu.pipeline_mode<synchronous>, transform_indices = @transform_3, window_bounds = array<i64: 32, 1280>}, {pipeline_mode = #tpu.pipeline_mode<synchronous>, transform_indices = @transform_4, window_bounds = array<i64: 1, 1280>}, {transform_indices = @transform_5, window_bounds = array<i64: 1, 1, 1280>}]} {
    %c0_i32 = arith.constant 0 : i32
    %0 = arith.cmpi eq, %arg1, %c0_i32 : i32
    %1 = arith.extui %0 : i1 to i32
    %c0_i32_0 = arith.constant 0 : i32
    %2 = arith.cmpi ne, %1, %c0_i32_0 : i32
    scf.if %2 {
      %cst_20 = arith.constant 0.000000e+00 : f32
      %36 = vector.broadcast %cst_20 : f32 to vector<1x1280xf32>
      %c0_21 = arith.constant 0 : index
      %c0_22 = arith.constant 0 : index
      %37 = vector.load %arg8[%c0_21, %c0_22] : memref<1x1280xf32, #tpu.memory_space<vmem>>, vector<1x1280xf32>
      tpu.vector_store %arg8[%c0_21, %c0_22], %36 {strides = array<i32>} : memref<1x1280xf32, #tpu.memory_space<vmem>>, vector<1x1280xf32>,
    } else {
    }
    %c0 = arith.constant 0 : index
    %c0_1 = arith.constant 0 : index
    %c0_2 = arith.constant 0 : index
    %3 = vector.load %arg2[%c0, %c0_1, %c0_2] : memref<1x32x27xbf16, #tpu.memory_space<vmem>>, vector<1x32x27xbf16>
    %4 = vector.shape_cast %3 : vector<1x32x27xbf16> to vector<32x27xbf16>
    %c0_3 = arith.constant 0 : index
    %c0_4 = arith.constant 0 : index
    %5 = vector.load %arg3[%c0_3, %c0_4] : memref<27x32xbf16, #tpu.memory_space<vmem>>, vector<27x32xbf16>
    %cst = arith.constant dense<0.000000e+00> : vector<32x32xf32>
    %6 = tpu.matmul %4, %5, %cst {dimension_numbers = #tpu.dot_dimension_numbers<[1], [0], [0], [1], [0, 0, 1, 1], [], []>} : vector<32x27xbf16>, vector<27x32xbf16>, vector<32x32xf32> -> vector<32x32xf32>
    %c0_5 = arith.constant 0 : index
    %c0_6 = arith.constant 0 : index
    %7 = vector.load %arg4[%c0_5, %c0_6] : memref<1x32xf32, #tpu.memory_space<vmem>>, vector<1x32xf32>
    %8 = vector.broadcast %7 : vector<1x32xf32> to vector<32x32xf32>
    %9 = arith.addf %6, %8 : vector<32x32xf32>
    %10 = arith.negf %9 : vector<32x32xf32>
    %11 = math.exp %10 : vector<32x32xf32>
    %cst_7 = arith.constant 1.000000e+00 : f32
    %12 = vector.broadcast %cst_7 : f32 to vector<32x32xf32>
    %13 = arith.addf %12, %11 : vector<32x32xf32>
    %14 = arith.divf %12, %13 : vector<32x32xf32>
    %15 = arith.mulf %9, %14 : vector<32x32xf32>
    %16 = arith.truncf %15 : vector<32x32xf32> to vector<32x32xbf16>
    %c0_8 = arith.constant 0 : index
    %c0_9 = arith.constant 0 : index
    %17 = vector.load %arg5[%c0_8, %c0_9] : memref<32x1280xbf16, #tpu.memory_space<vmem>>, vector<32x1280xbf16>
    %cst_10 = arith.constant dense<0.000000e+00> : vector<32x1280xf32>
    %18 = tpu.matmul %16, %17, %cst_10 {dimension_numbers = #tpu.dot_dimension_numbers<[1], [0], [0], [1], [0, 0, 1, 1], [], []>} : vector<32x32xbf16>, vector<32x1280xbf16>, vector<32x1280xf32> -> vector<32x1280xf32>
    %c0_11 = arith.constant 0 : index
    %c0_12 = arith.constant 0 : index
    %19 = vector.load %arg6[%c0_11, %c0_12] : memref<1x1280xf32, #tpu.memory_space<vmem>>, vector<1x1280xf32>
    %20 = vector.broadcast %19 : vector<1x1280xf32> to vector<32x1280xf32>
    %21 = arith.addf %18, %20 : vector<32x1280xf32>
    %22 = arith.negf %21 : vector<32x1280xf32>
    %23 = math.exp %22 : vector<32x1280xf32>
    %cst_13 = arith.constant 1.000000e+00 : f32
    %24 = vector.broadcast %cst_13 : f32 to vector<32x1280xf32>
    %25 = arith.addf %24, %23 : vector<32x1280xf32>
    %26 = arith.divf %24, %25 : vector<32x1280xf32>
    %27 = arith.mulf %21, %26 : vector<32x1280xf32>
    %c0_14 = arith.constant 0 : index
    %c0_15 = arith.constant 0 : index
    %28 = vector.load %arg8[%c0_14, %c0_15] : memref<1x1280xf32, #tpu.memory_space<vmem>>, vector<1x1280xf32>
    %cst_16 = arith.constant dense<0.000000e+00> : vector<1280xf32>
    %29 = vector.multi_reduction <add>, %27, %cst_16 [0] : vector<32x1280xf32> to vector<1280xf32>
    %30 = vector.shape_cast %29 : vector<1280xf32> to vector<1x1280xf32>
    %31 = arith.addf %28, %30 : vector<1x1280xf32>
    %c0_17 = arith.constant 0 : index
    %c0_18 = arith.constant 0 : index
    %32 = vector.load %arg8[%c0_17, %c0_18] : memref<1x1280xf32, #tpu.memory_space<vmem>>, vector<1x1280xf32>
    tpu.vector_store %arg8[%c0_17, %c0_18], %31 {strides = array<i32>} : memref<1x1280xf32, #tpu.memory_space<vmem>>, vector<1x1280xf32>,
    %c1_i32 = arith.constant 1 : i32
    %33 = arith.cmpi eq, %arg1, %c1_i32 : i32
    %34 = arith.extui %33 : i1 to i32
    %c0_i32_19 = arith.constant 0 : i32
    %35 = arith.cmpi ne, %34, %c0_i32_19 : i32
    scf.if %35 {
      %c0_20 = arith.constant 0 : index
      %c0_21 = arith.constant 0 : index
      %36 = vector.load %arg8[%c0_20, %c0_21] : memref<1x1280xf32, #tpu.memory_space<vmem>>, vector<1x1280xf32>
      %cst_22 = arith.constant 1.562500e-02 : f32
      %37 = vector.broadcast %cst_22 : f32 to vector<1x1280xf32>
      %38 = arith.mulf %36, %37 : vector<1x1280xf32>
      %c0_23 = arith.constant 0 : index
      %c0_24 = arith.constant 0 : index
      %c0_25 = arith.constant 0 : index
      %39 = vector.load %arg7[%c0_23, %c0_24, %c0_25] : memref<1x1x1280xf32, #tpu.memory_space<vmem>>, vector<1x1x1280xf32>
      %40 = vector.shape_cast %39 : vector<1x1x1280xf32> to vector<1x1280xf32>
      %41 = vector.shape_cast %38 : vector<1x1280xf32> to vector<1x1x1280xf32>
      tpu.vector_store %arg7[%c0_23, %c0_24, %c0_25], %41 {strides = array<i32>} : memref<1x1x1280xf32, #tpu.memory_space<vmem>>, vector<1x1x1280xf32>,
    } else {
    }
    return
  }
  func.func @transform_0(%arg0: i32, %arg1: i32) -> (i32, i32, i32) {
    %c0_i32 = arith.constant 0 : i32
    %c0_i32_0 = arith.constant 0 : i32
    return %arg0, %arg1, %c0_i32 : i32, i32, i32
  }
  func.func @transform_1(%arg0: i32, %arg1: i32) -> (i32, i32) {
    %c0_i32 = arith.constant 0 : i32
    %c0_i32_0 = arith.constant 0 : i32
    %c0_i32_1 = arith.constant 0 : i32
    return %c0_i32, %c0_i32_0 : i32, i32
  }
  func.func @transform_2(%arg0: i32, %arg1: i32) -> (i32, i32) {
    %c0_i32 = arith.constant 0 : i32
    %c0_i32_0 = arith.constant 0 : i32
    %c0_i32_1 = arith.constant 0 : i32
    return %c0_i32, %c0_i32_0 : i32, i32
  }
  func.func @transform_3(%arg0: i32, %arg1: i32) -> (i32, i32) {
    %c0_i32 = arith.constant 0 : i32
    %c0_i32_0 = arith.constant 0 : i32
    %c0_i32_1 = arith.constant 0 : i32
    return %c0_i32, %c0_i32_0 : i32, i32
  }
  func.func @transform_4(%arg0: i32, %arg1: i32) -> (i32, i32) {
    %c0_i32 = arith.constant 0 : i32
    %c0_i32_0 = arith.constant 0 : i32
    %c0_i32_1 = arith.constant 0 : i32
    return %c0_i32, %c0_i32_0 : i32, i32
  }
  func.func @transform_5(%arg0: i32, %arg1: i32) -> (i32, i32, i32) {
    %c0_i32 = arith.constant 0 : i32
    %c0_i32_0 = arith.constant 0 : i32
    %c0_i32_1 = arith.constant 0 : i32
    return %arg0, %c0_i32, %c0_i32_0 : i32, i32, i32
  }
}

</mosaic_0001>

<llo_original>
// kernel: tpu_custom_call.1
$region0: #{tpu_custom_call.1}
  #allocation0 [shape = 'u32[]', space=smem, size = 0x4, offset = 0x4, fixed_abs, tag = 'smem constant byte address 0x4 - core index']
  #allocation1 [shape = 'u32[144,128]{1,0:T(1,128)}', space=vmem, size = 0x12000, scoped, tag = 'internal scratch']
  #allocation2 [shape = 'f32[1,1280]{1,0:T(1,128)}', space=vmem, size = 0x1400, scoped, tag = 'scratch operand']
  %s0 = inlined_call_operand.vmem [shape: bf16[2,64,27], index: 0, kind: input, shape index: {}]
  %s1 = inlined_call_operand.vmem [shape: bf16[27,32], index: 1, kind: input, shape index: {}]
  %s2 = inlined_call_operand.vmem [shape: f32[1,32], index: 2, kind: input, shape index: {}]
  %s3 = inlined_call_operand.hbm [shape: bf16[32,1280], index: 3, kind: input, shape index: {}]
  %s4 = inlined_call_operand.vmem [shape: f32[1,1280], index: 4, kind: input, shape index: {}]
  %s5 = inlined_call_operand.hbm [shape: f32[2,1,1280], index: 5, kind: output, shape index: {}]
  %s6 = sld [smem:[#allocation0]]
  $region65: #{tpu_custom_call.1} parent=0
    _
  %s8 = ssub.s32 1, %s6
  %s9 = scalar_select 0, %s8, %s6
  $region1: #{tpu_custom_call.1} parent=0
    #allocation3 [shape = 'u8[81920]{0}', space=vmem, size = 0x14000, scoped, tag = 'input window, operand 3, single buffered']
    #allocation4 [shape = 's32[2]{0}', space=sflag, size = 0x8, scoped, tag = 'scoped memory for tpu_custom_call.1']
    #allocation5 [shape = 's32[2]{0}', space=sflag, size = 0x8, scoped, tag = 'scoped memory for tpu_custom_call.1']
    #allocation6 [shape = 'u8[10240]{0}', space=vmem, size = 0x2800, scoped, tag = 'output window, operand 0']
    %10 = vsyncpa [#allocation4], 0
    %11 = vsyncpa [#allocation5], 0
    %s12 = scalar_lea.sflag [#allocation5], 1
    %13 = vsyncpa %s12, 0
    loop: start=0, step=1, limit=6
    $region2: #{tpu_custom_call.1} parent=1 // loop_pre_header
      _
    $region3: #{tpu_custom_call.1} parent=1 // loop_header
      %s15 = sphi 0, %s19
      %p16 = scmp.ge.s32.totalorder %s15, 6
      %s22 = sphi 0, %s34
      %s23 = sphi 0, %s30
      %s24 = sphi 0, %s22
      %s25 = sphi 0, %s23
      %s26 = sphi 0, %s24
      %s27 = sphi 0, %s25
      %s39 = sphi 0, %s41
      %s42 = sphi 0, %s39
      %s43 = sphi 0, %s42
      %s59 = sphi 0, %s43
      %s63 = sphi 0, %s63
      %s65 = sphi 0, %s63
      %s66 = sphi 0, %s65
      %s80 = sphi 0, %s66
      %s84 = sphi 0, %s84
      %s86 = sphi 0, %s84
      %s87 = sphi 0, %s86
      %s101 = sphi 0, %s87
      %s105 = sphi 0, %s105
      %s107 = sphi 0, %s105
      %s108 = sphi 0, %s107
      %s122 = sphi 0, %s108
      %s126 = sphi 0, %s126
      %s128 = sphi 0, %s126
      %s129 = sphi 0, %s128
      %s143 = sphi 0, %s129
      %s149 = sphi 0, %s151
      %s152 = sphi 0, %s149
      %s153 = sphi 0, %s152
      %s169 = sphi 0, %s153
    $region4: #{tpu_custom_call.1} parent=1 // loop_header_branch
      %18 = sbr.rel (%p16) target = $region8
    $region5: #{tpu_custom_call.1} parent=1 // loop_body
      %s20 = ssub.s32 %s15, 1
      %s21 = ssub.s32 %s15, 2
      %s28 = sadd.s32 1, %s23
      %p29 = scmp.ge.s32.totalorder %s28, 2
      %s30 = scalar_select %p29, 0, %s28
      %s31 = sadd.s32 1, %s22
      %s32 = scalar_select %p29, %s31, %s22
      %p33 = scmp.ge.s32.totalorder %s32, 2
      %s34 = scalar_select %p33, 0, %s32
      %s35 = ssub.s32 %s22, %s34
      %s36 = ssub.s32 %s23, %s30
      %s37 = sor.u32 %s35, %s36
      %p38 = scmp.eq.s32.totalorder %s37, 0
      %s40 = sadd.s32 %s39, 1
      %s41 = scalar_select %p38, %s39, %s40
      %p44 = pneg %p38
      %p45 = scmp.eq.s32.totalorder %s15, 3
      %p46 = por %p44, %p45
      %p47 = scmp.ne.s32.totalorder %s39, %s42
      %p48 = scmp.eq.s32.totalorder %s15, 0
      %p49 = por %p47, %p48
      %p50 = scmp.ne.s32.totalorder %s39, %s42
      %p51 = scmp.eq.s32.totalorder %s20, 3
      %p52 = por %p50, %p51
      %p53 = scmp.ne.s32.totalorder %s42, %s43
      %p54 = scmp.eq.s32.totalorder %s20, 0
      %p55 = por %p53, %p54
      %p56 = scmp.ne.s32.totalorder %s42, %s43
      %p57 = scmp.eq.s32.totalorder %s21, 3
      %p58 = por %p56, %p57
      %p60 = scmp.ne.s32.totalorder %s43, %s59
      %p61 = scmp.eq.s32.totalorder %s21, 0
      %p62 = por %p60, %p61
      %s64 = sadd.s32 %s63, 1
      %p67 = scmp.eq.s32.totalorder %s15, 3
      %p68 = scmp.ne.s32.totalorder %s63, %s65
      %p69 = scmp.eq.s32.totalorder %s15, 0
      %p70 = por %p68, %p69
      %p71 = scmp.ne.s32.totalorder %s63, %s65
      %p72 = scmp.eq.s32.totalorder %s20, 3
      %p73 = por %p71, %p72
      %p74 = scmp.ne.s32.totalorder %s65, %s66
      %p75 = scmp.eq.s32.totalorder %s20, 0
      %p76 = por %p74, %p75
      %p77 = scmp.ne.s32.totalorder %s65, %s66
      %p78 = scmp.eq.s32.totalorder %s21, 3
      %p79 = por %p77, %p78
      %p81 = scmp.ne.s32.totalorder %s66, %s80
      %p82 = scmp.eq.s32.totalorder %s21, 0
      %p83 = por %p81, %p82
      %s85 = sadd.s32 %s84, 1
      %p88 = scmp.eq.s32.totalorder %s15, 3
      %p89 = scmp.ne.s32.totalorder %s84, %s86
      %p90 = scmp.eq.s32.totalorder %s15, 0
      %p91 = por %p89, %p90
      %p92 = scmp.ne.s32.totalorder %s84, %s86
      %p93 = scmp.eq.s32.totalorder %s20, 3
      %p94 = por %p92, %p93
      %p95 = scmp.ne.s32.totalorder %s86, %s87
      %p96 = scmp.eq.s32.totalorder %s20, 0
      %p97 = por %p95, %p96
      %p98 = scmp.ne.s32.totalorder %s86, %s87
      %p99 = scmp.eq.s32.totalorder %s21, 3
      %p100 = por %p98, %p99
      %p102 = scmp.ne.s32.totalorder %s87, %s101
      %p103 = scmp.eq.s32.totalorder %s21, 0
      %p104 = por %p102, %p103
      %s106 = sadd.s32 %s105, 1
      %p109 = scmp.eq.s32.totalorder %s15, 3
      %p110 = scmp.ne.s32.totalorder %s105, %s107
      %p111 = scmp.eq.s32.totalorder %s15, 0
      %p112 = por %p110, %p111
      %p113 = scmp.ne.s32.totalorder %s105, %s107
      %p114 = scmp.eq.s32.totalorder %s20, 3
      %p115 = por %p113, %p114
      %p116 = scmp.ne.s32.totalorder %s107, %s108
      %p117 = scmp.eq.s32.totalorder %s20, 0
      %p118 = por %p116, %p117
      %p119 = scmp.ne.s32.totalorder %s107, %s108
      %p120 = scmp.eq.s32.totalorder %s21, 3
      %p121 = por %p119, %p120
      %p123 = scmp.ne.s32.totalorder %s108, %s122
      %p124 = scmp.eq.s32.totalorder %s21, 0
      %p125 = por %p123, %p124
      %s127 = sadd.s32 %s126, 1
      %p130 = scmp.eq.s32.totalorder %s15, 3
      %p131 = scmp.ne.s32.totalorder %s126, %s128
      %p132 = scmp.eq.s32.totalorder %s15, 0
      %p133 = por %p131, %p132
      %p134 = scmp.ne.s32.totalorder %s126, %s128
      %p135 = scmp.eq.s32.totalorder %s20, 3
      %p136 = por %p134, %p135
      %p137 = scmp.ne.s32.totalorder %s128, %s129
      %p138 = scmp.eq.s32.totalorder %s20, 0
      %p139 = por %p137, %p138
      %p140 = scmp.ne.s32.totalorder %s128, %s129
      %p141 = scmp.eq.s32.totalorder %s21, 3
      %p142 = por %p140, %p141
      %p144 = scmp.ne.s32.totalorder %s129, %s143
      %p145 = scmp.eq.s32.totalorder %s21, 0
      %p146 = por %p144, %p145
      %s147 = ssub.s32 %s22, %s34
      %p148 = scmp.eq.s32.totalorder %s147, 0
      %s150 = sadd.s32 %s149, 1
      %s151 = scalar_select %p148, %s149, %s150
      %p154 = pneg %p148
      %p155 = scmp.eq.s32.totalorder %s15, 3
      %p156 = por %p154, %p155
      %p157 = scmp.ne.s32.totalorder %s149, %s152
      %p158 = scmp.eq.s32.totalorder %s15, 0
      %p159 = por %p157, %p158
      %p160 = scmp.ne.s32.totalorder %s149, %s152
      %p161 = scmp.eq.s32.totalorder %s20, 3
      %p162 = por %p160, %p161
      %p163 = scmp.ne.s32.totalorder %s152, %s153
      %p164 = scmp.eq.s32.totalorder %s20, 0
      %p165 = por %p163, %p164
      %p166 = scmp.ne.s32.totalorder %s152, %s153
      %p167 = scmp.eq.s32.totalorder %s21, 3
      %p168 = por %p166, %p167
      %p170 = scmp.ne.s32.totalorder %s153, %s169
      %p171 = scmp.eq.s32.totalorder %s21, 0
      %p172 = por %p170, %p171
      %p173 = scmp.le.s32.totalorder 1, %s15
      %p174 = scmp.lt.s32.totalorder %s15, 5
      %p175 = pnand %p173, %p174
      %p176 = pneg %p175
      // Predicated region
      $region9: #{tpu_custom_call.1} parent=5 // pred_check
        _
      $region10: #{tpu_custom_call.1} parent=5 // pred_check_branch
        %178 = sbr.rel (%p175) target = $region12
      $region11: #{tpu_custom_call.1} parent=5 // pred_region
        %s179 = ssub.s32 %s15, 1
        // Predicated region
        $region13: #{tpu_custom_call.1} parent=11 // pred_check
          %p180 = pneg %p76
        $region14: #{tpu_custom_call.1} parent=11 // pred_check_branch
          %182 = sbr.rel (%p180) target = $region16
        $region15: #{tpu_custom_call.1} parent=11 // pred_region
          _
        $region16: #{tpu_custom_call.1} parent=11 // pred_fallthru
          _
        // Predicated region
        $region17: #{tpu_custom_call.1} parent=11 // pred_check
          %p183 = pneg %p97
        $region18: #{tpu_custom_call.1} parent=11 // pred_check_branch
          %185 = sbr.rel (%p183) target = $region20
        $region19: #{tpu_custom_call.1} parent=11 // pred_region
          _
        $region20: #{tpu_custom_call.1} parent=11 // pred_fallthru
          _
        // Predicated region
        $region21: #{tpu_custom_call.1} parent=11 // pred_check
          %p186 = pneg %p118
        $region22: #{tpu_custom_call.1} parent=11 // pred_check_branch
          %188 = sbr.rel (%p186) target = $region24
        $region23: #{tpu_custom_call.1} parent=11 // pred_region
          %s190 = ssub.s32 2560, 2560
          %191 = vsyncadd [#allocation4], %s190
          %s192 = sshll.u32 [#allocation3], 4
          %s193 = int_to_ptr.vmem [resolvable:$true] %s192
          %198 = dma.hbm_to_vmem [thread:$0]  %s3, 2560, %s193, [#allocation4], 640, 640, 40
        $region24: #{tpu_custom_call.1} parent=11 // pred_fallthru
          _
        // Predicated region
        $region25: #{tpu_custom_call.1} parent=11 // pred_check
          %p199 = pneg %p139
        $region26: #{tpu_custom_call.1} parent=11 // pred_check_branch
          %201 = sbr.rel (%p199) target = $region28
        $region27: #{tpu_custom_call.1} parent=11 // pred_region
          _
        $region28: #{tpu_custom_call.1} parent=11 // pred_fallthru
          _
      $region12: #{tpu_custom_call.1} parent=5 // pred_fallthru
        _
      %p202 = scmp.lt.s32.totalorder %s15, 4
      // Predicated region
      $region29: #{tpu_custom_call.1} parent=5 // pred_check
        %p203 = pneg %p202
      $region30: #{tpu_custom_call.1} parent=5 // pred_check_branch
        %205 = sbr.rel (%p203) target = $region32
      $region31: #{tpu_custom_call.1} parent=5 // pred_region
        // Predicated region
        $region33: #{tpu_custom_call.1} parent=31 // pred_check
          %p206 = pneg %p49
        $region34: #{tpu_custom_call.1} parent=31 // pred_check_branch
          %208 = sbr.rel (%p206) target = $region36
        $region35: #{tpu_custom_call.1} parent=31 // pred_region
          %s209 = smul.u32 4, %s23
          %p210 = scmp.lt.s32.totalorder %s22, 1
          %s211 = scalar_select %p210, %s22, 1
          %p212 = scmp.lt.s32.totalorder %s209, 7
          %s213 = scalar_select %p212, %s209, 7
          %s214 = smul.addr %s211, 8
          %s215 = sadd.s32 %s213, %s214
          %s216 = smul.addr %s215, 4
          %s217 = scalar_lea.vmem %s0, %s216
          %s218 = smul.u32 4, %s23
        $region36: #{tpu_custom_call.1} parent=31 // pred_fallthru
          _
      $region32: #{tpu_custom_call.1} parent=5 // pred_fallthru
        _
      %p219 = scmp.le.s32.totalorder 1, %s15
      %p220 = scmp.lt.s32.totalorder %s15, 5
      %p221 = pnand %p219, %p220
      %p222 = pneg %p221
      // Predicated region
      $region37: #{tpu_custom_call.1} parent=5 // pred_check
        _
      $region38: #{tpu_custom_call.1} parent=5 // pred_check_branch
        %224 = sbr.rel (%p221) target = $region40
      $region39: #{tpu_custom_call.1} parent=5 // pred_region
        %s225 = ssub.s32 %s15, 1
        // Predicated region
        $region41: #{tpu_custom_call.1} parent=39 // pred_check
          %p226 = pneg %p118
        $region42: #{tpu_custom_call.1} parent=39 // pred_check_branch
          %228 = sbr.rel (%p226) target = $region44
        $region43: #{tpu_custom_call.1} parent=39 // pred_region
          %229 = dma.done [#allocation4], 2560
        $region44: #{tpu_custom_call.1} parent=39 // pred_fallthru
          _
        %s230 = smul.u32 4, %s25
        %p231 = scmp.lt.s32.totalorder %s24, 1
        %s232 = scalar_select %p231, %s24, 1
        %p233 = scmp.lt.s32.totalorder %s230, 7
        %s234 = scalar_select %p233, %s230, 7
        %s235 = smul.addr %s232, 8
        %s236 = sadd.s32 %s234, %s235
        %s237 = smul.addr %s236, 4
        %s238 = scalar_lea.vmem %s0, %s237
        %p239 = pneg %p55
        %p240 = pneg %p52
        %p241 = pneg %p76
        %p242 = pneg %p73
        %p243 = pneg %p97
        %p244 = pneg %p94
        %p245 = pneg %p118
        %p246 = pneg %p115
        %p247 = pneg %p139
        %p248 = pneg %p136
        %p249 = pneg %p165
        %p250 = pneg %p162
        %s251 = sand.u32 %s152, 1
        %s252 = scalar_lea.sflag [#allocation5], %s251
        %s253 = sand.u32 %s152, 1
        %s254 = smul.addr %s253, 10
        %s255 = scalar_lea.vmem [#allocation6], %s254
        %s256 = smul.u32 4, %s25
        %p257 = scmp.lt.s32.totalorder %s24, 1
        %s258 = scalar_select %p257, %s24, 1
        %p259 = scmp.lt.s32.totalorder %s256, 7
        %s260 = scalar_select %p259, %s256, 7
        %s261 = smul.addr %s258, 8
        %s262 = sadd.s32 %s260, %s261
        %s263 = smul.addr %s262, 4
        %s264 = scalar_lea.vmem %s0, %s263
        %s265 = smul.u32 4, %s25
        %p267 = scmp.eq.s32.totalorder %s25, 0
        // Predicated region
        $region45: #{tpu_custom_call.1} parent=39 // pred_check
          %p268 = pneg %p267
        $region46: #{tpu_custom_call.1} parent=39 // pred_check_branch
          %270 = sbr.rel (%p268) target = $region48
        $region47: #{tpu_custom_call.1} parent=39 // pred_region
          %271 = vst [vmem:[#allocation2] sm:$0xff] 0.0
          %v272 = vlaneseq
          %vm273 = vcmp.ge.s32.totalorder %v272, 0
          %vm274 = vcmp.lt.s32.totalorder %v272, 256
          %vm275 = vmand %vm273, %vm274
          %276 = vst.msk [vmem:[#allocation2 + $0x8] sm:$0x3] %vm275, 0.0
        $region48: #{tpu_custom_call.1} parent=39 // pred_fallthru
          _
        %v277 = vld [vmem:[%s264] sm:$0xf]
        %v278 = vld [vmem:[%s264 + $0x4] sm:$0xf]
        %v279 = vld [vmem:[%s264 + $0x8] sm:$0xf]
        %v280 = vld [vmem:[%s264 + $0xc] sm:$0xf]
        %v281 = vld [vmem:[%s1] sm:$0xf]
        %v282 = vld [vmem:[%s1 + $0x4] sm:$0xf]
        %v283 = vld [vmem:[%s1 + $0x8] sm:$0xf]
        %v284 = vld [vmem:[%s1 + $0xc] sm:$0x3]
        %v285 = vld [vmem:[%s2] sm:$0x1]
        %v287 = vlaneseq
        %v288 = vshrl.u32 %v287, 7
        %v289 = vsub.s32 0, %v288
        %v290 = vrot.slane %v285, %v289
        %v296 = vunpack.c.l.b16 %v277
        %v297 = vunpack.c.l.b16 %v278
        %v298 = vunpack.c.l.b16 %v279
        %v299 = vunpack.c.l.b16 %v280
        %v300 = vpack.c.b16 %v297, %v296
        %v301 = vpack.c.b16 %v299, %v298
        %v306 = vunpack.c.l.b16 %v281
        %v307 = vunpack.c.l.b16 %v282
        %v308 = vunpack.c.l.b16 %v283
        %v309 = vunpack.c.l.b16 %v284
        %v310 = vpack.c.b16 %v307, %v306
        %v311 = vpack.c.b16 %v309, %v308
        %vm313 = vcmask 220160
        %v315 = vsel %vm313, %v300, 0
        %v318 = vsel %vm313, %v301, 0
        %vm320 = vcmask 1044480
        %vm321 = vcmask 1045504
        %v322 = vsel %vm320, 4294967295, 65535
        %v323 = vsel %vm321, %v322, 0
        %v325 = vand.u32 %v311, %v323
        %327 = vmatprep.subr.bf16.mxu0 0
        %328 = vmatpush1.bf16.msra.mxu0 0
        %329 = vmatprep.subr.bf16.mxu0 0
        %330 = vmatpush1.bf16.msra.mxu0 0
        %331 = vmatprep.subr.bf16.mxu0 0
        %332 = vmatpush1.bf16.msra.mxu0 0
        %333 = vmatprep.subr.bf16.mxu0 0
        %334 = vmatpush1.bf16.msra.mxu0 0
        %335 = vmatprep.subr.bf16.mxu0 0
        %336 = vmatpush1.bf16.msra.mxu0 0
        %337 = vmatprep.subr.bf16.mxu0 0
        %338 = vmatpush1.bf16.msra.mxu0 0
        %339 = vmatprep.subr.bf16.mxu0 0
        %340 = vmatpush1.bf16.msra.mxu0 %v325
        %341 = vmatprep.subr.bf16.mxu0 0
        %342 = vmatpush1.bf16.msra.mxu0 %v310
        %343 = vmatprep.subr.bf16.mxu0 0
        %344 = vmatpush2.bf16.msra.mxu0 0
        %345 = vmatprep.subr.bf16.mxu0 0
        %346 = vmatpush2.bf16.msra.mxu0 0
        %347 = vmatprep.subr.bf16.mxu0 0
        %348 = vmatpush2.bf16.msra.mxu0 0
        %349 = vmatprep.subr.bf16.mxu0 0
        %350 = vmatpush2.bf16.msra.mxu0 0
        %351 = vmatprep.subr.bf16.mxu0 0
        %352 = vmatpush2.bf16.msra.mxu0 0
        %353 = vmatprep.subr.bf16.mxu0 0
        %354 = vmatpush2.bf16.msra.mxu0 0
        %355 = vmatprep.subr.bf16.mxu0 0
        %356 = vmatpush2.bf16.msra.mxu0 0
        %357 = vmatprep.subr.bf16.mxu0 0
        %358 = vmatpush2.bf16.msra.mxu0 0
        %359 = vmatprep.mubr.bf16.mxu0 0
        %360 = vmatmul.mubr.bf16.gmra.mxu0 %v315
        %v361 = vpop.f32.mrf.mxu0
        %v362 = vadd.f32 %v290, %v361
        %v363 = vpop.f32.mrf.mxu0
        %v364 = vpop.f32.mrf.mxu0
        %v365 = vadd.f32 %v290, %v364
        %v366 = vpop.f32.mrf.mxu0
        %367 = vmatprep.mubr.bf16.mxu0 0
        %368 = vmatmul.mubr.bf16.gmra.mxu0 %v318
        %v369 = vpop.f32.mrf.mxu0
        %v370 = vadd.f32 %v290, %v369
        %v371 = vpop.f32.mrf.mxu0
        %v372 = vpop.f32.mrf.mxu0
        %v373 = vadd.f32 %v290, %v372
        %v374 = vpop.f32.mrf.mxu0
        %375 = vdwg.mxu0
        %v376 = vxor.u32 %v362, 2147483648
        %v377 = vxor.u32 %v365, 2147483648
        %v378 = vxor.u32 %v370, 2147483648
        %v379 = vxor.u32 %v373, 2147483648
        %v380 = vmul.f32 %v376, 1.442695
        %v381 = vpow.pop %v380
        %v382 = vmul.f32 %v377, 1.442695
        %v383 = vpow.pop %v382
        %v384 = vmul.f32 %v378, 1.442695
        %v385 = vpow.pop %v384
        %v386 = vmul.f32 %v379, 1.442695
        %v387 = vpow.pop %v386
        %v388 = vadd.f32 %v381, 1.0
        %v389 = vadd.f32 %v383, 1.0
        %v390 = vadd.f32 %v385, 1.0
        %v391 = vadd.f32 %v387, 1.0
        %v392 = vrcp.pop %v388
        %v393 = vmul.f32 1.0, %v392
        %v394 = vrcp.pop %v389
        %v395 = vmul.f32 1.0, %v394
        %v396 = vrcp.pop %v390
        %v397 = vmul.f32 1.0, %v396
        %v398 = vrcp.pop %v391
        %v399 = vmul.f32 1.0, %v398
        %v400 = vmul.f32 %v362, %v393
        %v401 = vmul.f32 %v365, %v395
        %v402 = vmul.f32 %v370, %v397
        %v403 = vmul.f32 %v373, %v399
        %v404 = vpack.c.bf16 %v401, %v400
        %v405 = vpack.c.bf16 %v403, %v402
        %v406 = vld [vmem:[#allocation3] sm:$0xff]
        %v407 = vld [vmem:[#allocation3 + $0x8] sm:$0xff]
        %v408 = vld [vmem:[#allocation3 + $0x10] sm:$0xff]
        %v409 = vld [vmem:[#allocation3 + $0x18] sm:$0xff]
        %v410 = vld [vmem:[#allocation3 + $0x20] sm:$0xff]
        %v411 = vld [vmem:[#allocation3 + $0x28] sm:$0xff]
        %v412 = vld [vmem:[#allocation3 + $0x30] sm:$0xff]
        %v413 = vld [vmem:[#allocation3 + $0x38] sm:$0xff]
        %v414 = vld [vmem:[#allocation3 + $0x40] sm:$0xff]
        %v415 = vld [vmem:[#allocation3 + $0x48] sm:$0xff]
        %v416 = vld [vmem:[#allocation3 + $0x50] sm:$0xff]
        %v417 = vld [vmem:[#allocation3 + $0x58] sm:$0xff]
        %v418 = vld [vmem:[#allocation3 + $0x60] sm:$0xff]
        %v419 = vld [vmem:[#allocation3 + $0x68] sm:$0xff]
        %v420 = vld [vmem:[#allocation3 + $0x70] sm:$0xff]
        %v421 = vld [vmem:[#allocation3 + $0x78] sm:$0xff]
        %v422 = vld [vmem:[#allocation3 + $0x80] sm:$0xff]
        %v423 = vld [vmem:[#allocation3 + $0x88] sm:$0xff]
        %v424 = vld [vmem:[#allocation3 + $0x90] sm:$0xff]
        %v425 = vld [vmem:[#allocation3 + $0x98] sm:$0xff]
        %v426 = vld [vmem:[%s4] sm:$0xff]
        %v427 = vld [vmem:[%s4 + $0x8] sm:$0x3]
        %v430 = vlaneseq
        %v431 = vshrl.u32 %v430, 7
        %v432 = vsub.s32 0, %v431
        %v433 = vrot.slane %v426, %v432
        %v434 = vlaneseq
        %v435 = vshrl.u32 %v434, 7
        %v436 = vsub.s32 1, %v435
        %v437 = vrot.slane %v426, %v436
        %v438 = vlaneseq
        %v439 = vshrl.u32 %v438, 7
        %v440 = vsub.s32 2, %v439
        %v441 = vrot.slane %v426, %v440
        %v442 = vlaneseq
        %v443 = vshrl.u32 %v442, 7
        %v444 = vsub.s32 3, %v443
        %v445 = vrot.slane %v426, %v444
        %v446 = vlaneseq
        %v447 = vshrl.u32 %v446, 7
        %v448 = vsub.s32 4, %v447
        %v449 = vrot.slane %v426, %v448
        %v450 = vlaneseq
        %v451 = vshrl.u32 %v450, 7
        %v452 = vsub.s32 5, %v451
        %v453 = vrot.slane %v426, %v452
        %v454 = vlaneseq
        %v455 = vshrl.u32 %v454, 7
        %v456 = vsub.s32 6, %v455
        %v457 = vrot.slane %v426, %v456
        %v458 = vlaneseq
        %v459 = vshrl.u32 %v458, 7
        %v460 = vsub.s32 7, %v459
        %v461 = vrot.slane %v426, %v460
        %v462 = vlaneseq
        %v463 = vshrl.u32 %v462, 7
        %v464 = vsub.s32 0, %v463
        %v465 = vrot.slane %v427, %v464
        %v466 = vlaneseq
        %v467 = vshrl.u32 %v466, 7
        %v468 = vsub.s32 1, %v467
        %v469 = vrot.slane %v427, %v468
        %v500 = vunpack.c.l.b16 %v406
        %v501 = vunpack.c.h.b16 %v406
        %v502 = vunpack.c.l.b16 %v407
        %v503 = vunpack.c.h.b16 %v407
        %v504 = vunpack.c.l.b16 %v408
        %v505 = vunpack.c.h.b16 %v408
        %v506 = vunpack.c.l.b16 %v409
        %v507 = vunpack.c.h.b16 %v409
        %v508 = vunpack.c.l.b16 %v410
        %v509 = vunpack.c.h.b16 %v410
        %v510 = vunpack.c.l.b16 %v411
        %v511 = vunpack.c.h.b16 %v411
        %v512 = vunpack.c.l.b16 %v412
        %v513 = vunpack.c.h.b16 %v412
        %v514 = vunpack.c.l.b16 %v413
        %v515 = vunpack.c.h.b16 %v413
        %v516 = vunpack.c.l.b16 %v414
        %v517 = vunpack.c.h.b16 %v414
        %v518 = vunpack.c.l.b16 %v415
        %v519 = vunpack.c.h.b16 %v415
        %v520 = vunpack.c.l.b16 %v416
        %v521 = vunpack.c.h.b16 %v416
        %v522 = vunpack.c.l.b16 %v417
        %v523 = vunpack.c.h.b16 %v417
        %v524 = vunpack.c.l.b16 %v418
        %v525 = vunpack.c.h.b16 %v418
        %v526 = vunpack.c.l.b16 %v419
        %v527 = vunpack.c.h.b16 %v419
        %v528 = vunpack.c.l.b16 %v420
        %v529 = vunpack.c.h.b16 %v420
        %v530 = vunpack.c.l.b16 %v421
        %v531 = vunpack.c.h.b16 %v421
        %v532 = vunpack.c.l.b16 %v422
        %v533 = vunpack.c.h.b16 %v422
        %v534 = vunpack.c.l.b16 %v423
        %v535 = vunpack.c.h.b16 %v423
        %v536 = vunpack.c.l.b16 %v424
        %v537 = vunpack.c.h.b16 %v424
        %v538 = vunpack.c.l.b16 %v425
        %v539 = vunpack.c.h.b16 %v425
        %v540 = vpack.c.b16 %v510, %v500
        %v541 = vpack.c.b16 %v511, %v501
        %v542 = vpack.c.b16 %v512, %v502
        %v543 = vpack.c.b16 %v513, %v503
        %v544 = vpack.c.b16 %v514, %v504
        %v545 = vpack.c.b16 %v515, %v505
        %v546 = vpack.c.b16 %v516, %v506
        %v547 = vpack.c.b16 %v517, %v507
        %v548 = vpack.c.b16 %v518, %v508
        %v549 = vpack.c.b16 %v519, %v509
        %v550 = vpack.c.b16 %v530, %v520
        %v551 = vpack.c.b16 %v531, %v521
        %v552 = vpack.c.b16 %v532, %v522
        %v553 = vpack.c.b16 %v533, %v523
        %v554 = vpack.c.b16 %v534, %v524
        %v555 = vpack.c.b16 %v535, %v525
        %v556 = vpack.c.b16 %v536, %v526
        %v557 = vpack.c.b16 %v537, %v527
        %v558 = vpack.c.b16 %v538, %v528
        %v559 = vpack.c.b16 %v539, %v529
        %vm580 = vcmask 261120
        %v582 = vsel %vm580, %v404, 0
        %v585 = vsel %vm580, %v405, 0
        %587 = vmatprep.subr.bf16.mxu0 0
        %588 = vmatpush1.bf16.msra.mxu0 0
        %589 = vmatprep.subr.bf16.mxu0 0
        %590 = vmatpush1.bf16.msra.mxu0 0
        %591 = vmatprep.subr.bf16.mxu0 0
        %592 = vmatpush1.bf16.msra.mxu0 0
        %593 = vmatprep.subr.bf16.mxu0 0
        %594 = vmatpush1.bf16.msra.mxu0 0
        %595 = vmatprep.subr.bf16.mxu0 0
        %596 = vmatpush1.bf16.msra.mxu0 0
        %597 = vmatprep.subr.bf16.mxu0 0
        %598 = vmatpush1.bf16.msra.mxu0 0
        %599 = vmatprep.subr.bf16.mxu0 %v551
        %600 = vmatpush1.bf16.msra.mxu0 %v550
        %601 = vmatprep.subr.bf16.mxu0 %v541
        %602 = vmatpush1.bf16.msra.mxu0 %v540
        %603 = vmatprep.subr.bf16.mxu0 0
        %604 = vmatpush2.bf16.msra.mxu0 0
        %605 = vmatprep.subr.bf16.mxu0 0
        %606 = vmatpush2.bf16.msra.mxu0 0
        %607 = vmatprep.subr.bf16.mxu0 0
        %608 = vmatpush2.bf16.msra.mxu0 0
        %609 = vmatprep.subr.bf16.mxu0 0
        %610 = vmatpush2.bf16.msra.mxu0 0
        %611 = vmatprep.subr.bf16.mxu0 0
        %612 = vmatpush2.bf16.msra.mxu0 0
        %613 = vmatprep.subr.bf16.mxu0 0
        %614 = vmatpush2.bf16.msra.mxu0 0
        %615 = vmatprep.subr.bf16.mxu0 0
        %616 = vmatpush2.bf16.msra.mxu0 0
        %617 = vmatprep.subr.bf16.mxu0 0
        %618 = vmatpush2.bf16.msra.mxu0 0
        %619 = vmatprep.mubr.bf16.mxu0 0
        %620 = vmatmul.mubr.bf16.gmra.mxu0 %v582
        %v621 = vpop.f32.mrf.mxu0
        %v622 = vadd.f32 %v433, %v621
        %v623 = vpop.f32.mrf.mxu0
        %v624 = vadd.f32 %v437, %v623
        %v625 = vpop.f32.mrf.mxu0
        %v626 = vadd.f32 %v433, %v625
        %v627 = vpop.f32.mrf.mxu0
        %v628 = vadd.f32 %v437, %v627
        %629 = vmatprep.mubr.bf16.mxu0 0
        %630 = vmatmul.mubr.bf16.gmra.mxu0 %v585
        %v631 = vpop.f32.mrf.mxu0
        %v632 = vadd.f32 %v433, %v631
        %v633 = vpop.f32.mrf.mxu0
        %v634 = vadd.f32 %v437, %v633
        %v635 = vpop.f32.mrf.mxu0
        %v636 = vadd.f32 %v433, %v635
        %v637 = vpop.f32.mrf.mxu0
        %v638 = vadd.f32 %v437, %v637
        %639 = vdwg.mxu0
        %640 = vmatprep.subr.bf16.mxu0 0
        %641 = vmatpush1.bf16.msra.mxu0 0
        %642 = vmatprep.subr.bf16.mxu0 0
        %643 = vmatpush1.bf16.msra.mxu0 0
        %644 = vmatprep.subr.bf16.mxu0 0
        %645 = vmatpush1.bf16.msra.mxu0 0
        %646 = vmatprep.subr.bf16.mxu0 0
        %647 = vmatpush1.bf16.msra.mxu0 0
        %648 = vmatprep.subr.bf16.mxu0 0
        %649 = vmatpush1.bf16.msra.mxu0 0
        %650 = vmatprep.subr.bf16.mxu0 0
        %651 = vmatpush1.bf16.msra.mxu0 0
        %652 = vmatprep.subr.bf16.mxu0 %v553
        %653 = vmatpush1.bf16.msra.mxu0 %v552
        %654 = vmatprep.subr.bf16.mxu0 %v543
        %655 = vmatpush1.bf16.msra.mxu0 %v542
        %656 = vmatprep.subr.bf16.mxu0 0
        %657 = vmatpush2.bf16.msra.mxu0 0
        %658 = vmatprep.subr.bf16.mxu0 0
        %659 = vmatpush2.bf16.msra.mxu0 0
        %660 = vmatprep.subr.bf16.mxu0 0
        %661 = vmatpush2.bf16.msra.mxu0 0
        %662 = vmatprep.subr.bf16.mxu0 0
        %663 = vmatpush2.bf16.msra.mxu0 0
        %664 = vmatprep.subr.bf16.mxu0 0
        %665 = vmatpush2.bf16.msra.mxu0 0
        %666 = vmatprep.subr.bf16.mxu0 0
        %667 = vmatpush2.bf16.msra.mxu0 0
        %668 = vmatprep.subr.bf16.mxu0 0
        %669 = vmatpush2.bf16.msra.mxu0 0
        %670 = vmatprep.subr.bf16.mxu0 0
        %671 = vmatpush2.bf16.msra.mxu0 0
        %672 = vmatprep.mubr.bf16.mxu0 0
        %673 = vmatmul.mubr.bf16.gmra.mxu0 %v582
        %v674 = vpop.f32.mrf.mxu0
        %v675 = vadd.f32 %v441, %v674
        %v676 = vpop.f32.mrf.mxu0
        %v677 = vadd.f32 %v445, %v676
        %v678 = vpop.f32.mrf.mxu0
        %v679 = vadd.f32 %v441, %v678
        %v680 = vpop.f32.mrf.mxu0
        %v681 = vadd.f32 %v445, %v680
        %682 = vmatprep.mubr.bf16.mxu0 0
        %683 = vmatmul.mubr.bf16.gmra.mxu0 %v585
        %v684 = vpop.f32.mrf.mxu0
        %v685 = vadd.f32 %v441, %v684
        %v686 = vpop.f32.mrf.mxu0
        %v687 = vadd.f32 %v445, %v686
        %v688 = vpop.f32.mrf.mxu0
        %v689 = vadd.f32 %v441, %v688
        %v690 = vpop.f32.mrf.mxu0
        %v691 = vadd.f32 %v445, %v690
        %692 = vdwg.mxu0
        %693 = vmatprep.subr.bf16.mxu0 0
        %694 = vmatpush1.bf16.msra.mxu0 0
        %695 = vmatprep.subr.bf16.mxu0 0
        %696 = vmatpush1.bf16.msra.mxu0 0
        %697 = vmatprep.subr.bf16.mxu0 0
        %698 = vmatpush1.bf16.msra.mxu0 0
        %699 = vmatprep.subr.bf16.mxu0 0
        %700 = vmatpush1.bf16.msra.mxu0 0
        %701 = vmatprep.subr.bf16.mxu0 0
        %702 = vmatpush1.bf16.msra.mxu0 0
        %703 = vmatprep.subr.bf16.mxu0 0
        %704 = vmatpush1.bf16.msra.mxu0 0
        %705 = vmatprep.subr.bf16.mxu0 %v555
        %706 = vmatpush1.bf16.msra.mxu0 %v554
        %707 = vmatprep.subr.bf16.mxu0 %v545
        %708 = vmatpush1.bf16.msra.mxu0 %v544
        %709 = vmatprep.subr.bf16.mxu0 0
        %710 = vmatpush2.bf16.msra.mxu0 0
        %711 = vmatprep.subr.bf16.mxu0 0
        %712 = vmatpush2.bf16.msra.mxu0 0
        %713 = vmatprep.subr.bf16.mxu0 0
        %714 = vmatpush2.bf16.msra.mxu0 0
        %715 = vmatprep.subr.bf16.mxu0 0
        %716 = vmatpush2.bf16.msra.mxu0 0
        %717 = vmatprep.subr.bf16.mxu0 0
        %718 = vmatpush2.bf16.msra.mxu0 0
        %719 = vmatprep.subr.bf16.mxu0 0
        %720 = vmatpush2.bf16.msra.mxu0 0
        %721 = vmatprep.subr.bf16.mxu0 0
        %722 = vmatpush2.bf16.msra.mxu0 0
        %723 = vmatprep.subr.bf16.mxu0 0
        %724 = vmatpush2.bf16.msra.mxu0 0
        %725 = vmatprep.mubr.bf16.mxu0 0
        %726 = vmatmul.mubr.bf16.gmra.mxu0 %v582
        %v727 = vpop.f32.mrf.mxu0
        %v728 = vadd.f32 %v449, %v727
        %v729 = vpop.f32.mrf.mxu0
        %v730 = vadd.f32 %v453, %v729
        %v731 = vpop.f32.mrf.mxu0
        %v732 = vadd.f32 %v449, %v731
        %v733 = vpop.f32.mrf.mxu0
        %v734 = vadd.f32 %v453, %v733
        %735 = vmatprep.mubr.bf16.mxu0 0
        %736 = vmatmul.mubr.bf16.gmra.mxu0 %v585
        %v737 = vpop.f32.mrf.mxu0
        %v738 = vadd.f32 %v449, %v737
        %v739 = vpop.f32.mrf.mxu0
        %v740 = vadd.f32 %v453, %v739
        %v741 = vpop.f32.mrf.mxu0
        %v742 = vadd.f32 %v449, %v741
        %v743 = vpop.f32.mrf.mxu0
        %v744 = vadd.f32 %v453, %v743
        %745 = vdwg.mxu0
        %746 = vmatprep.subr.bf16.mxu0 0
        %747 = vmatpush1.bf16.msra.mxu0 0
        %748 = vmatprep.subr.bf16.mxu0 0
        %749 = vmatpush1.bf16.msra.mxu0 0
        %750 = vmatprep.subr.bf16.mxu0 0
        %751 = vmatpush1.bf16.msra.mxu0 0
        %752 = vmatprep.subr.bf16.mxu0 0
        %753 = vmatpush1.bf16.msra.mxu0 0
        %754 = vmatprep.subr.bf16.mxu0 0
        %755 = vmatpush1.bf16.msra.mxu0 0
        %756 = vmatprep.subr.bf16.mxu0 0
        %757 = vmatpush1.bf16.msra.mxu0 0
        %758 = vmatprep.subr.bf16.mxu0 %v557
        %759 = vmatpush1.bf16.msra.mxu0 %v556
        %760 = vmatprep.subr.bf16.mxu0 %v547
        %761 = vmatpush1.bf16.msra.mxu0 %v546
        %762 = vmatprep.subr.bf16.mxu0 0
        %763 = vmatpush2.bf16.msra.mxu0 0
        %764 = vmatprep.subr.bf16.mxu0 0
        %765 = vmatpush2.bf16.msra.mxu0 0
        %766 = vmatprep.subr.bf16.mxu0 0
        %767 = vmatpush2.bf16.msra.mxu0 0
        %768 = vmatprep.subr.bf16.mxu0 0
        %769 = vmatpush2.bf16.msra.mxu0 0
        %770 = vmatprep.subr.bf16.mxu0 0
        %771 = vmatpush2.bf16.msra.mxu0 0
        %772 = vmatprep.subr.bf16.mxu0 0
        %773 = vmatpush2.bf16.msra.mxu0 0
        %774 = vmatprep.subr.bf16.mxu0 0
        %775 = vmatpush2.bf16.msra.mxu0 0
        %776 = vmatprep.subr.bf16.mxu0 0
        %777 = vmatpush2.bf16.msra.mxu0 0
        %778 = vmatprep.mubr.bf16.mxu0 0
        %779 = vmatmul.mubr.bf16.gmra.mxu0 %v582
        %v780 = vpop.f32.mrf.mxu0
        %v781 = vadd.f32 %v457, %v780
        %v782 = vpop.f32.mrf.mxu0
        %v783 = vadd.f32 %v461, %v782
        %v784 = vpop.f32.mrf.mxu0
        %v785 = vadd.f32 %v457, %v784
        %v786 = vpop.f32.mrf.mxu0
        %v787 = vadd.f32 %v461, %v786
        %788 = vmatprep.mubr.bf16.mxu0 0
        %789 = vmatmul.mubr.bf16.gmra.mxu0 %v585
        %v790 = vpop.f32.mrf.mxu0
        %v791 = vadd.f32 %v457, %v790
        %v792 = vpop.f32.mrf.mxu0
        %v793 = vadd.f32 %v461, %v792
        %v794 = vpop.f32.mrf.mxu0
        %v795 = vadd.f32 %v457, %v794
        %v796 = vpop.f32.mrf.mxu0
        %v797 = vadd.f32 %v461, %v796
        %798 = vdwg.mxu0
        %799 = vmatprep.subr.bf16.mxu0 0
        %800 = vmatpush1.bf16.msra.mxu0 0
        %801 = vmatprep.subr.bf16.mxu0 0
        %802 = vmatpush1.bf16.msra.mxu0 0
        %803 = vmatprep.subr.bf16.mxu0 0
        %804 = vmatpush1.bf16.msra.mxu0 0
        %805 = vmatprep.subr.bf16.mxu0 0
        %806 = vmatpush1.bf16.msra.mxu0 0
        %807 = vmatprep.subr.bf16.mxu0 0
        %808 = vmatpush1.bf16.msra.mxu0 0
        %809 = vmatprep.subr.bf16.mxu0 0
        %810 = vmatpush1.bf16.msra.mxu0 0
        %811 = vmatprep.subr.bf16.mxu0 %v559
        %812 = vmatpush1.bf16.msra.mxu0 %v558
        %813 = vmatprep.subr.bf16.mxu0 %v549
        %814 = vmatpush1.bf16.msra.mxu0 %v548
        %815 = vmatprep.subr.bf16.mxu0 0
        %816 = vmatpush2.bf16.msra.mxu0 0
        %817 = vmatprep.subr.bf16.mxu0 0
        %818 = vmatpush2.bf16.msra.mxu0 0
        %819 = vmatprep.subr.bf16.mxu0 0
        %820 = vmatpush2.bf16.msra.mxu0 0
        %821 = vmatprep.subr.bf16.mxu0 0
        %822 = vmatpush2.bf16.msra.mxu0 0
        %823 = vmatprep.subr.bf16.mxu0 0
        %824 = vmatpush2.bf16.msra.mxu0 0
        %825 = vmatprep.subr.bf16.mxu0 0
        %826 = vmatpush2.bf16.msra.mxu0 0
        %827 = vmatprep.subr.bf16.mxu0 0
        %828 = vmatpush2.bf16.msra.mxu0 0
        %829 = vmatprep.subr.bf16.mxu0 0
        %830 = vmatpush2.bf16.msra.mxu0 0
        %831 = vmatprep.mubr.bf16.mxu0 0
        %832 = vmatmul.mubr.bf16.gmra.mxu0 %v582
        %v833 = vpop.f32.mrf.mxu0
        %v834 = vadd.f32 %v465, %v833
        %v835 = vpop.f32.mrf.mxu0
        %v836 = vadd.f32 %v469, %v835
        %v837 = vpop.f32.mrf.mxu0
        %v838 = vadd.f32 %v465, %v837
        %v839 = vpop.f32.mrf.mxu0
        %v840 = vadd.f32 %v469, %v839
        %841 = vmatprep.mubr.bf16.mxu0 0
        %842 = vmatmul.mubr.bf16.gmra.mxu0 %v585
        %v843 = vpop.f32.mrf.mxu0
        %v844 = vadd.f32 %v465, %v843
        %v845 = vpop.f32.mrf.mxu0
        %v846 = vadd.f32 %v469, %v845
        %v847 = vpop.f32.mrf.mxu0
        %v848 = vadd.f32 %v465, %v847
        %v849 = vpop.f32.mrf.mxu0
        %v850 = vadd.f32 %v469, %v849
        %851 = vdwg.mxu0
        %v852 = vxor.u32 %v622, 2147483648
        %v853 = vxor.u32 %v624, 2147483648
        %v854 = vxor.u32 %v675, 2147483648
        %v855 = vxor.u32 %v677, 2147483648
        %v856 = vxor.u32 %v728, 2147483648
        %v857 = vxor.u32 %v730, 2147483648
        %v858 = vxor.u32 %v781, 2147483648
        %v859 = vxor.u32 %v783, 2147483648
        %v860 = vxor.u32 %v834, 2147483648
        %v861 = vxor.u32 %v836, 2147483648
        %v862 = vxor.u32 %v626, 2147483648
        %v863 = vxor.u32 %v628, 2147483648
        %v864 = vxor.u32 %v679, 2147483648
        %v865 = vxor.u32 %v681, 2147483648
        %v866 = vxor.u32 %v732, 2147483648
        %v867 = vxor.u32 %v734, 2147483648
        %v868 = vxor.u32 %v785, 2147483648
        %v869 = vxor.u32 %v787, 2147483648
        %v870 = vxor.u32 %v838, 2147483648
        %v871 = vxor.u32 %v840, 2147483648
        %v872 = vxor.u32 %v632, 2147483648
        %v873 = vxor.u32 %v634, 2147483648
        %v874 = vxor.u32 %v685, 2147483648
        %v875 = vxor.u32 %v687, 2147483648
        %v876 = vxor.u32 %v738, 2147483648
        %v877 = vxor.u32 %v740, 2147483648
        %v878 = vxor.u32 %v791, 2147483648
        %v879 = vxor.u32 %v793, 2147483648
        %v880 = vxor.u32 %v844, 2147483648
        %v881 = vxor.u32 %v846, 2147483648
        %v882 = vxor.u32 %v636, 2147483648
        %v883 = vxor.u32 %v638, 2147483648
        %v884 = vxor.u32 %v689, 2147483648
        %v885 = vxor.u32 %v691, 2147483648
        %v886 = vxor.u32 %v742, 2147483648
        %v887 = vxor.u32 %v744, 2147483648
        %v888 = vxor.u32 %v795, 2147483648
        %v889 = vxor.u32 %v797, 2147483648
        %v890 = vxor.u32 %v848, 2147483648
        %v891 = vxor.u32 %v850, 2147483648
        %v892 = vmul.f32 %v852, 1.442695
        %v893 = vpow.pop %v892
        %v894 = vmul.f32 %v853, 1.442695
        %v895 = vpow.pop %v894
        %v896 = vmul.f32 %v854, 1.442695
        %v897 = vpow.pop %v896
        %v898 = vmul.f32 %v855, 1.442695
        %v899 = vpow.pop %v898
        %v900 = vmul.f32 %v856, 1.442695
        %v901 = vpow.pop %v900
        %v902 = vmul.f32 %v857, 1.442695
        %v903 = vpow.pop %v902
        %v904 = vmul.f32 %v858, 1.442695
        %v905 = vpow.pop %v904
        %v906 = vmul.f32 %v859, 1.442695
        %v907 = vpow.pop %v906
        %v908 = vmul.f32 %v860, 1.442695
        %v909 = vpow.pop %v908
        %v910 = vmul.f32 %v861, 1.442695
        %v911 = vpow.pop %v910
        %v912 = vmul.f32 %v862, 1.442695
        %v913 = vpow.pop %v912
        %v914 = vmul.f32 %v863, 1.442695
        %v915 = vpow.pop %v914
        %v916 = vmul.f32 %v864, 1.442695
        %v917 = vpow.pop %v916
        %v918 = vmul.f32 %v865, 1.442695
        %v919 = vpow.pop %v918
        %v920 = vmul.f32 %v866, 1.442695
        %v921 = vpow.pop %v920
        %v922 = vmul.f32 %v867, 1.442695
        %v923 = vpow.pop %v922
        %v924 = vmul.f32 %v868, 1.442695
        %v925 = vpow.pop %v924
        %v926 = vmul.f32 %v869, 1.442695
        %v927 = vpow.pop %v926
        %v928 = vmul.f32 %v870, 1.442695
        %v929 = vpow.pop %v928
        %v930 = vmul.f32 %v871, 1.442695
        %v931 = vpow.pop %v930
        %v932 = vmul.f32 %v872, 1.442695
        %v933 = vpow.pop %v932
        %v934 = vmul.f32 %v873, 1.442695
        %v935 = vpow.pop %v934
        %v936 = vmul.f32 %v874, 1.442695
        %v937 = vpow.pop %v936
        %v938 = vmul.f32 %v875, 1.442695
        %v939 = vpow.pop %v938
        %v940 = vmul.f32 %v876, 1.442695
        %v941 = vpow.pop %v940
        %v942 = vmul.f32 %v877, 1.442695
        %v943 = vpow.pop %v942
        %v944 = vmul.f32 %v878, 1.442695
        %v945 = vpow.pop %v944
        %v946 = vmul.f32 %v879, 1.442695
        %v947 = vpow.pop %v946
        %v948 = vmul.f32 %v880, 1.442695
        %v949 = vpow.pop %v948
        %v950 = vmul.f32 %v881, 1.442695
        %v951 = vpow.pop %v950
        %v952 = vmul.f32 %v882, 1.442695
        %v953 = vpow.pop %v952
        %v954 = vmul.f32 %v883, 1.442695
        %v955 = vpow.pop %v954
        %v956 = vmul.f32 %v884, 1.442695
        %v957 = vpow.pop %v956
        %v958 = vmul.f32 %v885, 1.442695
        %v959 = vpow.pop %v958
        %v960 = vmul.f32 %v886, 1.442695
        %v961 = vpow.pop %v960
        %v962 = vmul.f32 %v887, 1.442695
        %v963 = vpow.pop %v962
        %v964 = vmul.f32 %v888, 1.442695
        %v965 = vpow.pop %v964
        %v966 = vmul.f32 %v889, 1.442695
        %v967 = vpow.pop %v966
        %v968 = vmul.f32 %v890, 1.442695
        %v969 = vpow.pop %v968
        %v970 = vmul.f32 %v891, 1.442695
        %v971 = vpow.pop %v970
        %v972 = vadd.f32 %v893, 1.0
        %v973 = vadd.f32 %v895, 1.0
        %v974 = vadd.f32 %v897, 1.0
        %v975 = vadd.f32 %v899, 1.0
        %v976 = vadd.f32 %v901, 1.0
        %v977 = vadd.f32 %v903, 1.0
        %v978 = vadd.f32 %v905, 1.0
        %v979 = vadd.f32 %v907, 1.0
        %v980 = vadd.f32 %v909, 1.0
        %v981 = vadd.f32 %v911, 1.0
        %v982 = vadd.f32 %v913, 1.0
        %v983 = vadd.f32 %v915, 1.0
        %v984 = vadd.f32 %v917, 1.0
        %v985 = vadd.f32 %v919, 1.0
        %v986 = vadd.f32 %v921, 1.0
        %v987 = vadd.f32 %v923, 1.0
        %v988 = vadd.f32 %v925, 1.0
        %v989 = vadd.f32 %v927, 1.0
        %v990 = vadd.f32 %v929, 1.0
        %v991 = vadd.f32 %v931, 1.0
        %v992 = vadd.f32 %v933, 1.0
        %v993 = vadd.f32 %v935, 1.0
        %v994 = vadd.f32 %v937, 1.0
        %v995 = vadd.f32 %v939, 1.0
        %v996 = vadd.f32 %v941, 1.0
        %v997 = vadd.f32 %v943, 1.0
        %v998 = vadd.f32 %v945, 1.0
        %v999 = vadd.f32 %v947, 1.0
        %v1000 = vadd.f32 %v949, 1.0
        %v1001 = vadd.f32 %v951, 1.0
        %v1002 = vadd.f32 %v953, 1.0
        %v1003 = vadd.f32 %v955, 1.0
        %v1004 = vadd.f32 %v957, 1.0
        %v1005 = vadd.f32 %v959, 1.0
        %v1006 = vadd.f32 %v961, 1.0
        %v1007 = vadd.f32 %v963, 1.0
        %v1008 = vadd.f32 %v965, 1.0
        %v1009 = vadd.f32 %v967, 1.0
        %v1010 = vadd.f32 %v969, 1.0
        %v1011 = vadd.f32 %v971, 1.0
        %v1012 = vrcp.pop %v972
        %v1013 = vmul.f32 1.0, %v1012
        %v1014 = vrcp.pop %v973
        %v1015 = vmul.f32 1.0, %v1014
        %v1016 = vrcp.pop %v974
        %v1017 = vmul.f32 1.0, %v1016
        %v1018 = vrcp.pop %v975
        %v1019 = vmul.f32 1.0, %v1018
        %v1020 = vrcp.pop %v976
        %v1021 = vmul.f32 1.0, %v1020
        %v1022 = vrcp.pop %v977
        %v1023 = vmul.f32 1.0, %v1022
        %v1024 = vrcp.pop %v978
        %v1025 = vmul.f32 1.0, %v1024
        %v1026 = vrcp.pop %v979
        %v1027 = vmul.f32 1.0, %v1026
        %v1028 = vrcp.pop %v980
        %v1029 = vmul.f32 1.0, %v1028
        %v1030 = vrcp.pop %v981
        %v1031 = vmul.f32 1.0, %v1030
        %v1032 = vrcp.pop %v982
        %v1033 = vmul.f32 1.0, %v1032
        %v1034 = vrcp.pop %v983
        %v1035 = vmul.f32 1.0, %v1034
        %v1036 = vrcp.pop %v984
        %v1037 = vmul.f32 1.0, %v1036
        %v1038 = vrcp.pop %v985
        %v1039 = vmul.f32 1.0, %v1038
        %v1040 = vrcp.pop %v986
        %v1041 = vmul.f32 1.0, %v1040
        %v1042 = vrcp.pop %v987
        %v1043 = vmul.f32 1.0, %v1042
        %v1044 = vrcp.pop %v988
        %v1045 = vmul.f32 1.0, %v1044
        %v1046 = vrcp.pop %v989
        %v1047 = vmul.f32 1.0, %v1046
        %v1048 = vrcp.pop %v990
        %v1049 = vmul.f32 1.0, %v1048
        %v1050 = vrcp.pop %v991
        %v1051 = vmul.f32 1.0, %v1050
        %v1052 = vrcp.pop %v992
        %v1053 = vmul.f32 1.0, %v1052
        %v1054 = vrcp.pop %v993
        %v1055 = vmul.f32 1.0, %v1054
        %v1056 = vrcp.pop %v994
        %v1057 = vmul.f32 1.0, %v1056
        %v1058 = vrcp.pop %v995
        %v1059 = vmul.f32 1.0, %v1058
        %v1060 = vrcp.pop %v996
        %v1061 = vmul.f32 1.0, %v1060
        %v1062 = vrcp.pop %v997
        %v1063 = vmul.f32 1.0, %v1062
        %v1064 = vrcp.pop %v998
        %v1065 = vmul.f32 1.0, %v1064
        %v1066 = vrcp.pop %v999
        %v1067 = vmul.f32 1.0, %v1066
        %v1068 = vrcp.pop %v1000
        %v1069 = vmul.f32 1.0, %v1068
        %v1070 = vrcp.pop %v1001
        %v1071 = vmul.f32 1.0, %v1070
        %v1072 = vrcp.pop %v1002
        %v1073 = vmul.f32 1.0, %v1072
        %v1074 = vrcp.pop %v1003
        %v1075 = vmul.f32 1.0, %v1074
        %v1076 = vrcp.pop %v1004
        %v1077 = vmul.f32 1.0, %v1076
        %v1078 = vrcp.pop %v1005
        %v1079 = vmul.f32 1.0, %v1078
        %v1080 = vrcp.pop %v1006
        %v1081 = vmul.f32 1.0, %v1080
        %v1082 = vrcp.pop %v1007
        %v1083 = vmul.f32 1.0, %v1082
        %v1084 = vrcp.pop %v1008
        %v1085 = vmul.f32 1.0, %v1084
        %v1086 = vrcp.pop %v1009
        %v1087 = vmul.f32 1.0, %v1086
        %v1088 = vrcp.pop %v1010
        %v1089 = vmul.f32 1.0, %v1088
        %v1090 = vrcp.pop %v1011
        %v1091 = vmul.f32 1.0, %v1090
        %v1092 = vmul.f32 %v622, %v1013
        %v1093 = vmul.f32 %v624, %v1015
        %v1094 = vmul.f32 %v675, %v1017
        %v1095 = vmul.f32 %v677, %v1019
        %v1096 = vmul.f32 %v728, %v1021
        %v1097 = vmul.f32 %v730, %v1023
        %v1098 = vmul.f32 %v781, %v1025
        %v1099 = vmul.f32 %v783, %v1027
        %v1100 = vmul.f32 %v834, %v1029
        %v1101 = vmul.f32 %v836, %v1031
        %v1102 = vmul.f32 %v626, %v1033
        %v1103 = vmul.f32 %v628, %v1035
        %v1104 = vmul.f32 %v679, %v1037
        %v1105 = vmul.f32 %v681, %v1039
        %v1106 = vmul.f32 %v732, %v1041
        %v1107 = vmul.f32 %v734, %v1043
        %v1108 = vmul.f32 %v785, %v1045
        %v1109 = vmul.f32 %v787, %v1047
        %v1110 = vmul.f32 %v838, %v1049
        %v1111 = vmul.f32 %v840, %v1051
        %v1112 = vmul.f32 %v632, %v1053
        %v1113 = vmul.f32 %v634, %v1055
        %v1114 = vmul.f32 %v685, %v1057
        %v1115 = vmul.f32 %v687, %v1059
        %v1116 = vmul.f32 %v738, %v1061
        %v1117 = vmul.f32 %v740, %v1063
        %v1118 = vmul.f32 %v791, %v1065
        %v1119 = vmul.f32 %v793, %v1067
        %v1120 = vmul.f32 %v844, %v1069
        %v1121 = vmul.f32 %v846, %v1071
        %v1122 = vmul.f32 %v636, %v1073
        %v1123 = vmul.f32 %v638, %v1075
        %v1124 = vmul.f32 %v689, %v1077
        %v1125 = vmul.f32 %v691, %v1079
        %v1126 = vmul.f32 %v742, %v1081
        %v1127 = vmul.f32 %v744, %v1083
        %v1128 = vmul.f32 %v795, %v1085
        %v1129 = vmul.f32 %v797, %v1087
        %v1130 = vmul.f32 %v848, %v1089
        %v1131 = vmul.f32 %v850, %v1091
        %v1132 = vld [vmem:[#allocation2] sm:$0xff]
        %v1133 = vld [vmem:[#allocation2 + $0x8] sm:$0x3]
        %v1134 = vadd.f32 %v1092, %v1102
        %v1135 = vadd.f32 %v1134, %v1112
        %v1136 = vadd.f32 %v1135, %v1122
        %v1137 = vrot.slane %v1136, 4
        %v1138 = vadd.f32 %v1136, %v1137
        %v1139 = vrot.slane %v1138, 2
        %v1140 = vadd.f32 %v1138, %v1139
        %v1141 = vrot.slane %v1140, 1
        %v1142 = vadd.f32 %v1140, %v1141
        %v1143 = vadd.f32 %v1093, %v1103
        %v1144 = vadd.f32 %v1143, %v1113
        %v1145 = vadd.f32 %v1144, %v1123
        %v1146 = vrot.slane %v1145, 4
        %v1147 = vadd.f32 %v1145, %v1146
        %v1148 = vrot.slane %v1147, 2
        %v1149 = vadd.f32 %v1147, %v1148
        %v1150 = vrot.slane %v1149, 1
        %v1151 = vadd.f32 %v1149, %v1150
        %v1152 = vadd.f32 %v1094, %v1104
        %v1153 = vadd.f32 %v1152, %v1114
        %v1154 = vadd.f32 %v1153, %v1124
        %v1155 = vrot.slane %v1154, 4
        %v1156 = vadd.f32 %v1154, %v1155
        %v1157 = vrot.slane %v1156, 2
        %v1158 = vadd.f32 %v1156, %v1157
        %v1159 = vrot.slane %v1158, 1
        %v1160 = vadd.f32 %v1158, %v1159
        %v1161 = vadd.f32 %v1095, %v1105
        %v1162 = vadd.f32 %v1161, %v1115
        %v1163 = vadd.f32 %v1162, %v1125
        %v1164 = vrot.slane %v1163, 4
        %v1165 = vadd.f32 %v1163, %v1164
        %v1166 = vrot.slane %v1165, 2
        %v1167 = vadd.f32 %v1165, %v1166
        %v1168 = vrot.slane %v1167, 1
        %v1169 = vadd.f32 %v1167, %v1168
        %v1170 = vadd.f32 %v1096, %v1106
        %v1171 = vadd.f32 %v1170, %v1116
        %v1172 = vadd.f32 %v1171, %v1126
        %v1173 = vrot.slane %v1172, 4
        %v1174 = vadd.f32 %v1172, %v1173
        %v1175 = vrot.slane %v1174, 2
        %v1176 = vadd.f32 %v1174, %v1175
        %v1177 = vrot.slane %v1176, 1
        %v1178 = vadd.f32 %v1176, %v1177
        %v1179 = vadd.f32 %v1097, %v1107
        %v1180 = vadd.f32 %v1179, %v1117
        %v1181 = vadd.f32 %v1180, %v1127
        %v1182 = vrot.slane %v1181, 4
        %v1183 = vadd.f32 %v1181, %v1182
        %v1184 = vrot.slane %v1183, 2
        %v1185 = vadd.f32 %v1183, %v1184
        %v1186 = vrot.slane %v1185, 1
        %v1187 = vadd.f32 %v1185, %v1186
        %v1188 = vadd.f32 %v1098, %v1108
        %v1189 = vadd.f32 %v1188, %v1118
        %v1190 = vadd.f32 %v1189, %v1128
        %v1191 = vrot.slane %v1190, 4
        %v1192 = vadd.f32 %v1190, %v1191
        %v1193 = vrot.slane %v1192, 2
        %v1194 = vadd.f32 %v1192, %v1193
        %v1195 = vrot.slane %v1194, 1
        %v1196 = vadd.f32 %v1194, %v1195
        %v1197 = vadd.f32 %v1099, %v1109
        %v1198 = vadd.f32 %v1197, %v1119
        %v1199 = vadd.f32 %v1198, %v1129
        %v1200 = vrot.slane %v1199, 4
        %v1201 = vadd.f32 %v1199, %v1200
        %v1202 = vrot.slane %v1201, 2
        %v1203 = vadd.f32 %v1201, %v1202
        %v1204 = vrot.slane %v1203, 1
        %v1205 = vadd.f32 %v1203, %v1204
        %v1206 = vadd.f32 %v1100, %v1110
        %v1207 = vadd.f32 %v1206, %v1120
        %v1208 = vadd.f32 %v1207, %v1130
        %v1209 = vrot.slane %v1208, 4
        %v1210 = vadd.f32 %v1208, %v1209
        %v1211 = vrot.slane %v1210, 2
        %v1212 = vadd.f32 %v1210, %v1211
        %v1213 = vrot.slane %v1212, 1
        %v1214 = vadd.f32 %v1212, %v1213
        %v1215 = vadd.f32 %v1101, %v1111
        %v1216 = vadd.f32 %v1215, %v1121
        %v1217 = vadd.f32 %v1216, %v1131
        %v1218 = vrot.slane %v1217, 4
        %v1219 = vadd.f32 %v1217, %v1218
        %v1220 = vrot.slane %v1219, 2
        %v1221 = vadd.f32 %v1219, %v1220
        %v1222 = vrot.slane %v1221, 1
        %v1223 = vadd.f32 %v1221, %v1222
        %v1234 = vcombine.low %v1142, %v1151
        %v1235 = vcombine.low %v1160, %v1169
        %v1236 = vcombine.low %v1178, %v1187
        %v1237 = vcombine.low %v1196, %v1205
        %v1239 = vunpack.c.l.s4 1966171168
        %v1240 = vunpack.c.0.s8 %v1239
        %v1241 = vlaneseq
        %v1242 = vshrl.u32 %v1241, 7
        %v1243 = vsub.s32 %v1240, %v1242
        %v1244 = vrot.slane %v1234, %v1243
        %v1246 = vunpack.c.l.s4 1966171168
        %v1247 = vunpack.c.0.s8 %v1246
        %v1248 = vlaneseq
        %v1249 = vshrl.u32 %v1248, 7
        %v1250 = vsub.s32 %v1247, %v1249
        %v1251 = vrot.slane %v1235, %v1250
        %v1253 = vunpack.c.l.s4 1966171168
        %v1254 = vunpack.c.0.s8 %v1253
        %v1255 = vlaneseq
        %v1256 = vshrl.u32 %v1255, 7
        %v1257 = vsub.s32 %v1254, %v1256
        %v1258 = vrot.slane %v1236, %v1257
        %v1260 = vunpack.c.l.s4 1966171168
        %v1261 = vunpack.c.0.s8 %v1260
        %v1262 = vlaneseq
        %v1263 = vshrl.u32 %v1262, 7
        %v1264 = vsub.s32 %v1261, %v1263
        %v1265 = vrot.slane %v1237, %v1264
        %v1266 = vcombine.low %v1244, %v1251
        %v1267 = vcombine.low %v1258, %v1265
        %v1269 = vunpack.c.l.s4 1966171168
        %v1270 = vunpack.c.0.s8 %v1269
        %v1271 = vlaneseq
        %v1272 = vshrl.u32 %v1271, 7
        %v1273 = vsub.s32 %v1270, %v1272
        %v1274 = vrot.slane %v1266, %v1273
        %v1276 = vunpack.c.l.s4 1966171168
        %v1277 = vunpack.c.0.s8 %v1276
        %v1278 = vlaneseq
        %v1279 = vshrl.u32 %v1278, 7
        %v1280 = vsub.s32 %v1277, %v1279
        %v1281 = vrot.slane %v1267, %v1280
        %v1282 = vcombine.low %v1274, %v1281
        %v1283 = vcombine.low %v1214, %v1223
        %v1285 = vunpack.c.l.s4 1966171168
        %v1286 = vunpack.c.0.s8 %v1285
        %v1287 = vlaneseq
        %v1288 = vshrl.u32 %v1287, 7
        %v1289 = vsub.s32 %v1286, %v1288
        %v1290 = vrot.slane %v1283, %v1289
        %v1292 = vunpack.c.l.s4 1966171168
        %v1293 = vunpack.c.0.s8 %v1292
        %v1294 = vlaneseq
        %v1295 = vshrl.u32 %v1294, 7
        %v1296 = vsub.s32 %v1293, %v1295
        %v1297 = vrot.slane %v1290, %v1296
        %v1300 = vadd.f32 %v1132, %v1282
        %v1301 = vadd.f32 %v1133, %v1297
        %1302 = vst [vmem:[#allocation2] sm:$0xff] %v1300
        %v1303 = vlaneseq
        %vm1304 = vcmp.ge.s32.totalorder %v1303, 0
        %vm1305 = vcmp.lt.s32.totalorder %v1303, 256
        %vm1306 = vmand %vm1304, %vm1305
        %1307 = vst.msk [vmem:[#allocation2 + $0x8] sm:$0x3] %vm1306, %v1301
        %p1308 = scmp.eq.s32.totalorder %s25, 1
        // Predicated region
        $region49: #{tpu_custom_call.1} parent=39 // pred_check
          %p1309 = pneg %p1308
        $region50: #{tpu_custom_call.1} parent=39 // pred_check_branch
          %1311 = sbr.rel (%p1309) target = $region52
        $region51: #{tpu_custom_call.1} parent=39 // pred_region
          %v1312 = vld [vmem:[#allocation2] sm:$0xff]
          %v1313 = vld [vmem:[#allocation2 + $0x8] sm:$0x3]
          %v1314 = vmul.f32 %v1312, 0.015625
          %v1315 = vmul.f32 %v1313, 0.015625
          %1316 = vst [vmem:[%s255] sm:$0xff] %v1314
          %1317 = vst.msk [vmem:[%s255 + $0x8] sm:$0x3] %vm1306, %v1315
        $region52: #{tpu_custom_call.1} parent=39 // pred_fallthru
          _
        %s1318 = sand.u32 %s152, 1
        %s1319 = scalar_lea.sflag [#allocation5], %s1318
        %s1320 = sand.u32 %s152, 1
        %s1321 = smul.addr %s1320, 10
        %s1322 = scalar_lea.vmem [#allocation6], %s1321
        // Predicated region
        $region53: #{tpu_custom_call.1} parent=39 // pred_check
          %p1323 = pneg %p162
        $region54: #{tpu_custom_call.1} parent=39 // pred_check_branch
          %1325 = sbr.rel (%p1323) target = $region56
        $region55: #{tpu_custom_call.1} parent=39 // pred_region
          %s1327 = ssub.s32 160, 160
          %1328 = vsyncadd %s1319, %s1327
          %s1329 = smul.addr %s24, 10
          %s1330 = smul.addr %s1329, 16
          %s1331 = scalar_lea.hbm %s5, %s1330
          %s1333 = sshll.u32 %s1322, 4
          %s1334 = int_to_ptr.vmem [resolvable:$true] %s1333
          %1336 = dma.vmem_to_hbm [thread:$0]  %s1334, 160, %s1331, %s1319
        $region56: #{tpu_custom_call.1} parent=39 // pred_fallthru
          _
      $region40: #{tpu_custom_call.1} parent=5 // pred_fallthru
        _
      %p1337 = scmp.le.s32.totalorder 2, %s15
      // Predicated region
      $region57: #{tpu_custom_call.1} parent=5 // pred_check
        %p1338 = pneg %p1337
      $region58: #{tpu_custom_call.1} parent=5 // pred_check_branch
        %1340 = sbr.rel (%p1338) target = $region60
      $region59: #{tpu_custom_call.1} parent=5 // pred_region
        %s1341 = ssub.s32 %s15, 2
        // Predicated region
        $region61: #{tpu_custom_call.1} parent=59 // pred_check
          %p1342 = pneg %p168
        $region62: #{tpu_custom_call.1} parent=59 // pred_check_branch
          %1344 = sbr.rel (%p1342) target = $region64
        $region63: #{tpu_custom_call.1} parent=59 // pred_region
          %s1345 = sand.u32 %s153, 1
          %s1346 = scalar_lea.sflag [#allocation5], %s1345
          %s1347 = sand.u32 %s153, 1
          %s1348 = smul.addr %s1347, 10
          %s1349 = scalar_lea.vmem [#allocation6], %s1348
          %1350 = dma.done %s1346, 160
        $region64: #{tpu_custom_call.1} parent=59 // pred_fallthru
          _
      $region60: #{tpu_custom_call.1} parent=5 // pred_fallthru
        _
    $region6: #{tpu_custom_call.1} parent=1 // loop_footer
      %s19 = sadd.s32 1, %s15
    $region7: #{tpu_custom_call.1} parent=1 // loop_footer_branch
      %14 = sbr.rel target = $region3
    $region8: #{tpu_custom_call.1} parent=1 // loop_exit
      _
    %1351 = vsyncpa [#allocation4], 1
    %s1352 = scalar_lea.sflag [#allocation4], 1
    %1353 = vsyncpa %s1352, 1
    %1354 = vsyncpa [#allocation5], 1
    %s1355 = scalar_lea.sflag [#allocation5], 1
    %1356 = vsyncpa %s1355, 1

</llo_original>
